<compile_context>
chip_gen: v7x
topology: tpu7x:2x2x1
jax: 0.10.0
libtpu: 0.0.40
codegen_flags: <defaults>
</compile_context>

<pallas_src>
import functools

import jax
import jax.numpy as jnp
from jax import lax
from jax.experimental import pallas as pl
from jax.experimental.pallas import tpu as pltpu


def _round_up(x, m):
    return -(-x // m) * m


def _sublane(dtype):
    # Minimum sublane granularity per dtype: f32 -> 8, bf16 -> 16, int8/fp8 -> 32.
    return {4: 8, 2: 16, 1: 32}.get(jnp.dtype(dtype).itemsize, 8)


def _choose_tm(m_rows, dtype, cap=512):
    sub = _sublane(dtype)
    m_al = _round_up(m_rows, sub)
    tm = min(cap, m_al)
    # Prefer >= 2 grid steps so the "parallel" grid axis can be sharded across
    # both v7x TensorCores (near-neutral on v5e/v6e).
    if m_al > sub and pl.cdiv(m_al, tm) < 2:
        tm = max(sub, _round_up(m_al // 2, sub))
    return tm


def _resblock_kernel(x_ref, w_ref, p_ref, o_ref, *, c_real, eps):
    """One row-tile of: GELU(LayerNorm(x @ W^T + b)) + x.

    x_ref: (tm, Cp)   row tile; feature dim zero-padded to Cp (lane-dense)
    w_ref: (Cp, Cp)   W^T, zero-padded, resident across grid steps
    p_ref: (3, Cp)    row 0 = bias, row 1 = gamma, row 2 = beta (zero-padded)
    o_ref: (tm, Cp)
    """
    x = x_ref[...]
    w = w_ref[...]

    bias = p_ref[0:1, :]
    gamma = p_ref[1:2, :]
    beta = p_ref[2:3, :]

    # Linear on the MXU: native-dtype operands, f32 accumulation.
    y = jnp.dot(x, w, preferred_element_type=jnp.float32) + bias

    # LayerNorm over the *real* feature columns only (padded lanes excluded).
    cp = y.shape[-1]
    col = lax.broadcasted_iota(jnp.int32, (1, cp), 1)
    valid = col < c_real
    inv_c = 1.0 / float(c_real)

    y = jnp.where(valid, y, 0.0)
    mu = jnp.sum(y, axis=-1, keepdims=True) * inv_c
    d = jnp.where(valid, y - mu, 0.0)
    var = jnp.sum(d * d, axis=-1, keepdims=True) * inv_c
    y = (y - mu) * lax.rsqrt(var + eps)
    y = y * gamma + beta          # padded lanes -> 0 (gamma/beta zero-padded)

    # Exact GELU (erf form, matches torch.nn.GELU default).
    y = 0.5 * y * (1.0 + lax.erf(y * 0.7071067811865475))

    # Residual.
    o_ref[...] = (y + x.astype(jnp.float32)).astype(o_ref.dtype)


def resblock(x, w, b, gamma, beta, *, eps=1e-5, tm=None):
    """x: (B, N, C); w: (C_out, C_in) PyTorch layout; b/gamma/beta: (C_out,)."""
    B, N, C_in = x.shape
    C_out, C_in_w = w.shape
    assert C_in_w == C_in, "weight in_dim mismatch"
    assert C_out == C_in, "residual add requires out_dim == in_dim"

    M = B * N
    if tm is None:
        tm = _choose_tm(M, x.dtype)
    Mp = _round_up(M, tm)
    Cp = _round_up(C_out, 128)      # lane-dense feature dim

    # Zero-pad once on the XLA side; slice the result back at the end.
    x2d = jnp.pad(x.reshape(M, C_in), ((0, Mp - M), (0, Cp - C_in)))
    wt = jnp.pad(jnp.transpose(w),
                 ((0, Cp - C_in), (0, Cp - C_out))).astype(x.dtype)
    params = jnp.pad(jnp.stack([b, gamma, beta], axis=0),
                     ((0, 0), (0, Cp - C_out))).astype(jnp.float32)

    kernel = functools.partial(_resblock_kernel,
                               c_real=int(C_out), eps=float(eps))

    itemsize = max(jnp.dtype(x.dtype).itemsize, 2)
    vmem_bytes = (2 * itemsize * (2 * tm * Cp)      # double-buffered x + out tiles
                  + itemsize * Cp * Cp * 2          # resident W^T (buffered)
                  + 4 * 3 * Cp * 2                  # fused bias/gamma/beta
                  + (8 << 20))                      # headroom
    vmem_bytes = int(min(vmem_bytes, 96 << 20))

    out2d = pl.pallas_call(
        kernel,
        out_shape=jax.ShapeDtypeStruct((Mp, Cp), x.dtype),
        grid_spec=pltpu.PrefetchScalarGridSpec(
            num_scalar_prefetch=0,
            grid=(Mp // tm,),
            in_specs=[
                pl.BlockSpec((tm, Cp), lambda i: (i, 0)),    # x row tile
                pl.BlockSpec((Cp, Cp), lambda i: (0, 0)),    # W^T (full, resident)
                pl.BlockSpec((3, Cp), lambda i: (0, 0)),     # bias/gamma/beta
            ],
            out_specs=pl.BlockSpec((tm, Cp), lambda i: (i, 0)),
        ),
        compiler_params=pltpu.CompilerParams(
            dimension_semantics=("parallel",),
            vmem_limit_bytes=vmem_bytes,
        ),
    )(x2d, wt, params)

    return out2d[:M, :C_out].reshape(B, N, C_out)


def _reference(x, w, b, gamma, beta, eps=1e-5):
    y = jnp.einsum("bnc,oc->bno", x, w) + b
    mu = jnp.mean(y, axis=-1, keepdims=True)
    var = jnp.mean(jnp.square(y - mu), axis=-1, keepdims=True)
    y = (y - mu) / jnp.sqrt(var + eps) * gamma + beta
    y = 0.5 * y * (1.0 + lax.erf(y / jnp.sqrt(2.0)))
    return y + x


if __name__ == "__main__":
    key = jax.random.PRNGKey(0)
    B, N, C = 2, 8, 32  # in_dim = out_dim = 32 (residual requires equality)

    k_x, k_w, k_b = jax.random.split(key, 3)
    x = jax.random.normal(k_x, (B, N, C), dtype=jnp.float32)

    # Deterministic synthetic parameters (Linear weight/bias, LayerNorm affine).
    w = jax.random.normal(k_w, (C, C), dtype=jnp.float32) * (1.0 / jnp.sqrt(C))
    b = jax.random.normal(k_b, (C,), dtype=jnp.float32) * 0.01
    gamma = jnp.ones((C,), dtype=jnp.float32)
    beta = jnp.zeros((C,), dtype=jnp.float32)

    out = jax.block_until_ready(resblock(x, w, b, gamma, beta))

    ref = _reference(x, w, b, gamma, beta)
    assert out.shape == (B, N, C)
    assert jnp.allclose(out, ref, atol=2e-3, rtol=2e-3), "mismatch vs reference"

    print("KERNEL_OK")
</pallas_src>

<mosaic_0001>
module attributes {stable_mosaic.version = 11 : i64} {
  func.func @_resblock_kernel(%arg0: i32, %arg1: memref<8x128xf32, #tpu.memory_space<vmem>>, %arg2: memref<128x128xf32, #tpu.memory_space<vmem>>, %arg3: memref<3x128xf32, #tpu.memory_space<vmem>>, %arg4: memref<8x128xf32, #tpu.memory_space<vmem>>) attributes {dimension_semantics = [#tpu.dimension_semantics<parallel>], iteration_bounds = array<i64: 2>, scalar_prefetch = 0 : i64, scratch_operands = 0 : i64, tpu.core_type = #tpu.core_type<tc>, window_params = [{transform_indices = @transform_0, window_bounds = array<i64: 8, 128>}, {pipeline_mode = #tpu.pipeline_mode<synchronous>, transform_indices = @transform_1, window_bounds = array<i64: 128, 128>}, {pipeline_mode = #tpu.pipeline_mode<synchronous>, transform_indices = @transform_2, window_bounds = array<i64: 3, 128>}, {transform_indices = @transform_3, window_bounds = array<i64: 8, 128>}]} {
    %c0 = arith.constant 0 : index
    %c0_0 = arith.constant 0 : index
    %0 = vector.load %arg1[%c0, %c0_0] : memref<8x128xf32, #tpu.memory_space<vmem>>, vector<8x128xf32>
    %c0_1 = arith.constant 0 : index
    %c0_2 = arith.constant 0 : index
    %1 = vector.load %arg2[%c0_1, %c0_2] : memref<128x128xf32, #tpu.memory_space<vmem>>, vector<128x128xf32>
    %c0_3 = arith.constant 0 : index
    %c0_4 = arith.constant 0 : index
    %2 = vector.load %arg3[%c0_3, %c0_4] : memref<3x128xf32, #tpu.memory_space<vmem>>, vector<1x128xf32>
    %c1 = arith.constant 1 : index
    %c0_5 = arith.constant 0 : index
    %3 = vector.load %arg3[%c1, %c0_5] : memref<3x128xf32, #tpu.memory_space<vmem>>, vector<1x128xf32>
    %c2 = arith.constant 2 : index
    %c0_6 = arith.constant 0 : index
    %4 = vector.load %arg3[%c2, %c0_6] : memref<3x128xf32, #tpu.memory_space<vmem>>, vector<1x128xf32>
    %cst = arith.constant dense<0.000000e+00> : vector<8x128xf32>
    %5 = tpu.matmul %0, %1, %cst {dimension_numbers = #tpu.dot_dimension_numbers<[1], [0], [0], [1], [0, 0, 1, 1], [], []>} : vector<8x128xf32>, vector<128x128xf32>, vector<8x128xf32> -> vector<8x128xf32>
    %6 = vector.broadcast %2 : vector<1x128xf32> to vector<8x128xf32>
    %7 = arith.addf %5, %6 : vector<8x128xf32>
    %8 = tpu.iota {dimensions = array<i32: 1>} : vector<1x128xi32>
    %c32_i32 = arith.constant 32 : i32
    %9 = vector.broadcast %c32_i32 : i32 to vector<1x128xi32>
    %10 = arith.cmpi slt, %8, %9 : vector<1x128xi32>
    %cst_7 = arith.constant 0.000000e+00 : f32
    %11 = vector.shape_cast %10 : vector<1x128xi1> to vector<1x128xi1>
    %12 = vector.broadcast %11 : vector<1x128xi1> to vector<8x128xi1>
    %13 = vector.broadcast %cst_7 : f32 to vector<8x128xf32>
    %14 = arith.select %12, %7, %13 : vector<8x128xi1>, vector<8x128xf32>
    %cst_8 = arith.constant dense<0.000000e+00> : vector<8xf32>
    %15 = vector.multi_reduction <add>, %14, %cst_8 [1] : vector<8x128xf32> to vector<8xf32>
    %16 = vector.shape_cast %15 : vector<8xf32> to vector<8x1xf32>
    %cst_9 = arith.constant 3.125000e-02 : f32
    %17 = vector.broadcast %cst_9 : f32 to vector<8x1xf32>
    %18 = arith.mulf %16, %17 : vector<8x1xf32>
    %19 = vector.broadcast %18 : vector<8x1xf32> to vector<8x128xf32>
    %20 = arith.subf %14, %19 : vector<8x128xf32>
    %cst_10 = arith.constant 0.000000e+00 : f32
    %21 = vector.shape_cast %10 : vector<1x128xi1> to vector<1x128xi1>
    %22 = vector.broadcast %21 : vector<1x128xi1> to vector<8x128xi1>
    %23 = vector.broadcast %cst_10 : f32 to vector<8x128xf32>
    %24 = arith.select %22, %20, %23 : vector<8x128xi1>, vector<8x128xf32>
    %25 = arith.mulf %24, %24 : vector<8x128xf32>
    %cst_11 = arith.constant dense<0.000000e+00> : vector<8xf32>
    %26 = vector.multi_reduction <add>, %25, %cst_11 [1] : vector<8x128xf32> to vector<8xf32>
    %27 = vector.shape_cast %26 : vector<8xf32> to vector<8x1xf32>
    %cst_12 = arith.constant 3.125000e-02 : f32
    %28 = vector.broadcast %cst_12 : f32 to vector<8x1xf32>
    %29 = arith.mulf %27, %28 : vector<8x1xf32>
    %30 = vector.broadcast %18 : vector<8x1xf32> to vector<8x128xf32>
    %31 = arith.subf %14, %30 : vector<8x128xf32>
    %cst_13 = arith.constant 9.99999974E-6 : f32
    %32 = vector.broadcast %cst_13 : f32 to vector<8x1xf32>
    %33 = arith.addf %29, %32 : vector<8x1xf32>
    %34 = math.rsqrt %33 : vector<8x1xf32>
    %35 = vector.broadcast %34 : vector<8x1xf32> to vector<8x128xf32>
    %36 = arith.mulf %31, %35 : vector<8x128xf32>
    %37 = vector.broadcast %3 : vector<1x128xf32> to vector<8x128xf32>
    %38 = arith.mulf %36, %37 : vector<8x128xf32>
    %39 = vector.broadcast %4 : vector<1x128xf32> to vector<8x128xf32>
    %40 = arith.addf %38, %39 : vector<8x128xf32>
    %cst_14 = arith.constant 5.000000e-01 : f32
    %41 = vector.broadcast %cst_14 : f32 to vector<8x128xf32>
    %42 = arith.mulf %41, %40 : vector<8x128xf32>
    %cst_15 = arith.constant 0.707106769 : f32
    %43 = vector.broadcast %cst_15 : f32 to vector<8x128xf32>
    %44 = arith.mulf %40, %43 : vector<8x128xf32>
    %45 = math.erf %44 : vector<8x128xf32>
    %cst_16 = arith.constant 1.000000e+00 : f32
    %46 = vector.broadcast %cst_16 : f32 to vector<8x128xf32>
    %47 = arith.addf %46, %45 : vector<8x128xf32>
    %48 = arith.mulf %42, %47 : vector<8x128xf32>
    %49 = arith.addf %48, %0 : vector<8x128xf32>
    %c0_17 = arith.constant 0 : index
    %c0_18 = arith.constant 0 : index
    %50 = vector.load %arg4[%c0_17, %c0_18] : memref<8x128xf32, #tpu.memory_space<vmem>>, vector<8x128xf32>
    tpu.vector_store %arg4[%c0_17, %c0_18], %49 {strides = array<i32>} : memref<8x128xf32, #tpu.memory_space<vmem>>, vector<8x128xf32>,
    return
  }
  func.func @transform_0(%arg0: i32) -> (i32, i32) {
    %c0_i32 = arith.constant 0 : i32
    %c0_i32_0 = arith.constant 0 : i32
    return %arg0, %c0_i32 : i32, i32
  }
  func.func @transform_1(%arg0: i32) -> (i32, i32) {
    %c0_i32 = arith.constant 0 : i32
    %c0_i32_0 = arith.constant 0 : i32
    %c0_i32_1 = arith.constant 0 : i32
    return %c0_i32, %c0_i32_0 : i32, i32
  }
  func.func @transform_2(%arg0: i32) -> (i32, i32) {
    %c0_i32 = arith.constant 0 : i32
    %c0_i32_0 = arith.constant 0 : i32
    %c0_i32_1 = arith.constant 0 : i32
    return %c0_i32, %c0_i32_0 : i32, i32
  }
  func.func @transform_3(%arg0: i32) -> (i32, i32) {
    %c0_i32 = arith.constant 0 : i32
    %c0_i32_0 = arith.constant 0 : i32
    return %arg0, %c0_i32 : i32, i32
  }
}

</mosaic_0001>

<llo_original>
// kernel: tpu_custom_call.1
$region0: #{tpu_custom_call.1}
  #allocation0 [shape = 'u32[]', space=smem, size = 0x4, offset = 0x4, fixed_abs, tag = 'smem constant byte address 0x4 - core index']
  #allocation1 [shape = 'u32[144,128]{1,0:T(1,128)}', space=vmem, size = 0x12000, scoped, tag = 'internal scratch']
  %s0 = inlined_call_operand.hbm [shape: f32[16,128], index: 0, kind: input, shape index: {}]
  %s1 = inlined_call_operand.hbm [shape: f32[128,128], index: 1, kind: input, shape index: {}]
  %s2 = inlined_call_operand.vmem [shape: f32[3,128], index: 2, kind: input, shape index: {}]
  %s3 = inlined_call_operand.hbm [shape: f32[16,128], index: 3, kind: output, shape index: {}]
  %s4 = sld [smem:[#allocation0]]
  $region53: #{tpu_custom_call.1} parent=0
    _
  %s6 = ssub.s32 1, %s4
  %s7 = scalar_select 0, %s6, %s4
  $region1: #{tpu_custom_call.1} parent=0
    #allocation2 [shape = 'u8[8192]{0}', space=vmem, size = 0x2000, scoped, tag = 'input window, operand 0']
    #allocation3 [shape = 's32[2]{0}', space=sflag, size = 0x8, scoped, tag = 'scoped memory for tpu_custom_call.1']
    #allocation4 [shape = 's32[2]{0}', space=sflag, size = 0x8, scoped, tag = 'scoped memory for tpu_custom_call.1']
    #allocation5 [shape = 'u8[65536]{0}', space=vmem, size = 0x10000, scoped, tag = 'input window, operand 1, single buffered']
    #allocation6 [shape = 's32[1]{0}', space=sflag, size = 0x4, scoped, tag = 'scoped memory for tpu_custom_call.1']
    #allocation7 [shape = 'u8[8192]{0}', space=vmem, size = 0x2000, scoped, tag = 'output window, operand 0']
    %8 = vsyncpa [#allocation3], 0
    %s9 = scalar_lea.sflag [#allocation3], 1
    %10 = vsyncpa %s9, 0
    %11 = vsyncpa [#allocation6], 0
    %12 = vsyncpa [#allocation4], 0
    %s13 = scalar_lea.sflag [#allocation4], 1
    %14 = vsyncpa %s13, 0
    loop: start=0, step=1, limit=4
    $region2: #{tpu_custom_call.1} parent=1 // loop_pre_header
      _
    $region3: #{tpu_custom_call.1} parent=1 // loop_header
      %s16 = sphi 0, %s20
      %p17 = scmp.ge.s32.totalorder %s16, 4
      %s26 = sphi 0, %s28
      %s29 = sphi 0, %s26
      %s30 = sphi 0, %s29
      %s46 = sphi 0, %s30
      %s50 = sphi 0, %s50
      %s52 = sphi 0, %s50
      %s53 = sphi 0, %s52
      %s67 = sphi 0, %s53
      %s71 = sphi 0, %s71
      %s73 = sphi 0, %s71
      %s74 = sphi 0, %s73
      %s88 = sphi 0, %s74
      %s94 = sphi 0, %s96
      %s97 = sphi 0, %s94
      %s98 = sphi 0, %s97
      %s114 = sphi 0, %s98
    $region4: #{tpu_custom_call.1} parent=1 // loop_header_branch
      %19 = sbr.rel (%p17) target = $region8
    $region5: #{tpu_custom_call.1} parent=1 // loop_body
      %s21 = ssub.s32 %s16, 1
      %s22 = ssub.s32 %s16, 2
      %s23 = sadd.s32 %s16, 1
      %s24 = ssub.s32 %s16, %s23
      %p25 = scmp.eq.s32.totalorder %s24, 0
      %s27 = sadd.s32 %s26, 1
      %s28 = scalar_select %p25, %s26, %s27
      %p31 = pneg %p25
      %p32 = scmp.eq.s32.totalorder %s16, 1
      %p33 = por %p31, %p32
      %p34 = scmp.ne.s32.totalorder %s26, %s29
      %p35 = scmp.eq.s32.totalorder %s16, 0
      %p36 = por %p34, %p35
      %p37 = scmp.ne.s32.totalorder %s26, %s29
      %p38 = scmp.eq.s32.totalorder %s21, 1
      %p39 = por %p37, %p38
      %p40 = scmp.ne.s32.totalorder %s29, %s30
      %p41 = scmp.eq.s32.totalorder %s21, 0
      %p42 = por %p40, %p41
      %p43 = scmp.ne.s32.totalorder %s29, %s30
      %p44 = scmp.eq.s32.totalorder %s22, 1
      %p45 = por %p43, %p44
      %p47 = scmp.ne.s32.totalorder %s30, %s46
      %p48 = scmp.eq.s32.totalorder %s22, 0
      %p49 = por %p47, %p48
      %s51 = sadd.s32 %s50, 1
      %p54 = scmp.eq.s32.totalorder %s16, 1
      %p55 = scmp.ne.s32.totalorder %s50, %s52
      %p56 = scmp.eq.s32.totalorder %s16, 0
      %p57 = por %p55, %p56
      %p58 = scmp.ne.s32.totalorder %s50, %s52
      %p59 = scmp.eq.s32.totalorder %s21, 1
      %p60 = por %p58, %p59
      %p61 = scmp.ne.s32.totalorder %s52, %s53
      %p62 = scmp.eq.s32.totalorder %s21, 0
      %p63 = por %p61, %p62
      %p64 = scmp.ne.s32.totalorder %s52, %s53
      %p65 = scmp.eq.s32.totalorder %s22, 1
      %p66 = por %p64, %p65
      %p68 = scmp.ne.s32.totalorder %s53, %s67
      %p69 = scmp.eq.s32.totalorder %s22, 0
      %p70 = por %p68, %p69
      %s72 = sadd.s32 %s71, 1
      %p75 = scmp.eq.s32.totalorder %s16, 1
      %p76 = scmp.ne.s32.totalorder %s71, %s73
      %p77 = scmp.eq.s32.totalorder %s16, 0
      %p78 = por %p76, %p77
      %p79 = scmp.ne.s32.totalorder %s71, %s73
      %p80 = scmp.eq.s32.totalorder %s21, 1
      %p81 = por %p79, %p80
      %p82 = scmp.ne.s32.totalorder %s73, %s74
      %p83 = scmp.eq.s32.totalorder %s21, 0
      %p84 = por %p82, %p83
      %p85 = scmp.ne.s32.totalorder %s73, %s74
      %p86 = scmp.eq.s32.totalorder %s22, 1
      %p87 = por %p85, %p86
      %p89 = scmp.ne.s32.totalorder %s74, %s88
      %p90 = scmp.eq.s32.totalorder %s22, 0
      %p91 = por %p89, %p90
      %s92 = ssub.s32 %s16, %s23
      %p93 = scmp.eq.s32.totalorder %s92, 0
      %s95 = sadd.s32 %s94, 1
      %s96 = scalar_select %p93, %s94, %s95
      %p99 = pneg %p93
      %p100 = scmp.eq.s32.totalorder %s16, 1
      %p101 = por %p99, %p100
      %p102 = scmp.ne.s32.totalorder %s94, %s97
      %p103 = scmp.eq.s32.totalorder %s16, 0
      %p104 = por %p102, %p103
      %p105 = scmp.ne.s32.totalorder %s94, %s97
      %p106 = scmp.eq.s32.totalorder %s21, 1
      %p107 = por %p105, %p106
      %p108 = scmp.ne.s32.totalorder %s97, %s98
      %p109 = scmp.eq.s32.totalorder %s21, 0
      %p110 = por %p108, %p109
      %p111 = scmp.ne.s32.totalorder %s97, %s98
      %p112 = scmp.eq.s32.totalorder %s22, 1
      %p113 = por %p111, %p112
      %p115 = scmp.ne.s32.totalorder %s98, %s114
      %p116 = scmp.eq.s32.totalorder %s22, 0
      %p117 = por %p115, %p116
      %p118 = scmp.le.s32.totalorder 1, %s16
      %p119 = scmp.lt.s32.totalorder %s16, 3
      %p120 = pnand %p118, %p119
      %p121 = pneg %p120
      // Predicated region
      $region9: #{tpu_custom_call.1} parent=5 // pred_check
        _
      $region10: #{tpu_custom_call.1} parent=5 // pred_check_branch
        %123 = sbr.rel (%p120) target = $region12
      $region11: #{tpu_custom_call.1} parent=5 // pred_region
        %s124 = ssub.s32 %s16, 1
        // Predicated region
        $region13: #{tpu_custom_call.1} parent=11 // pred_check
          %p125 = pneg %p63
        $region14: #{tpu_custom_call.1} parent=11 // pred_check_branch
          %127 = sbr.rel (%p125) target = $region16
        $region15: #{tpu_custom_call.1} parent=11 // pred_region
          %s129 = ssub.s32 2048, 2048
          %130 = vsyncadd [#allocation6], %s129
          %s131 = sshll.u32 [#allocation5], 4
          %s132 = int_to_ptr.vmem [resolvable:$true] %s131
          %137 = dma.hbm_to_vmem [thread:$0]  %s1, 2048, %s132, [#allocation6], 128, 128, 8
        $region16: #{tpu_custom_call.1} parent=11 // pred_fallthru
          _
        // Predicated region
        $region17: #{tpu_custom_call.1} parent=11 // pred_check
          %p138 = pneg %p84
        $region18: #{tpu_custom_call.1} parent=11 // pred_check_branch
          %140 = sbr.rel (%p138) target = $region20
        $region19: #{tpu_custom_call.1} parent=11 // pred_region
          _
        $region20: #{tpu_custom_call.1} parent=11 // pred_fallthru
          _
      $region12: #{tpu_custom_call.1} parent=5 // pred_fallthru
        _
      %p141 = scmp.lt.s32.totalorder %s16, 2
      // Predicated region
      $region21: #{tpu_custom_call.1} parent=5 // pred_check
        %p142 = pneg %p141
      $region22: #{tpu_custom_call.1} parent=5 // pred_check_branch
        %144 = sbr.rel (%p142) target = $region24
      $region23: #{tpu_custom_call.1} parent=5 // pred_region
        // Predicated region
        $region25: #{tpu_custom_call.1} parent=23 // pred_check
          %p145 = pneg %p36
        $region26: #{tpu_custom_call.1} parent=23 // pred_check_branch
          %147 = sbr.rel (%p145) target = $region28
        $region27: #{tpu_custom_call.1} parent=23 // pred_region
          %s148 = sand.u32 %s26, 1
          %s149 = scalar_lea.sflag [#allocation3], %s148
          %s150 = sand.u32 %s26, 1
          %s151 = smul.addr %s150, 8
          %s152 = scalar_lea.vmem [#allocation2], %s151
          %s154 = ssub.s32 128, 128
          %155 = vsyncadd %s149, %s154
          %s156 = smul.addr %s16, 128
          %s157 = scalar_lea.hbm %s0, %s156
          %s159 = sshll.u32 %s152, 4
          %s160 = int_to_ptr.vmem [resolvable:$true] %s159
          %162 = dma.hbm_to_vmem [thread:$0]  %s157, 128, %s160, %s149
        $region28: #{tpu_custom_call.1} parent=23 // pred_fallthru
          _
      $region24: #{tpu_custom_call.1} parent=5 // pred_fallthru
        _
      %p163 = scmp.le.s32.totalorder 1, %s16
      %p164 = scmp.lt.s32.totalorder %s16, 3
      %p165 = pnand %p163, %p164
      %p166 = pneg %p165
      // Predicated region
      $region29: #{tpu_custom_call.1} parent=5 // pred_check
        _
      $region30: #{tpu_custom_call.1} parent=5 // pred_check_branch
        %168 = sbr.rel (%p165) target = $region32
      $region31: #{tpu_custom_call.1} parent=5 // pred_region
        %s169 = ssub.s32 %s16, 1
        %s170 = sand.u32 %s29, 1
        %s171 = scalar_lea.sflag [#allocation3], %s170
        %s172 = sand.u32 %s29, 1
        %s173 = smul.addr %s172, 8
        %s174 = scalar_lea.vmem [#allocation2], %s173
        // Predicated region
        $region33: #{tpu_custom_call.1} parent=31 // pred_check
          %p175 = pneg %p42
        $region34: #{tpu_custom_call.1} parent=31 // pred_check_branch
          %177 = sbr.rel (%p175) target = $region36
        $region35: #{tpu_custom_call.1} parent=31 // pred_region
          %178 = dma.done %s171, 128
        $region36: #{tpu_custom_call.1} parent=31 // pred_fallthru
          _
        // Predicated region
        $region37: #{tpu_custom_call.1} parent=31 // pred_check
          %p179 = pneg %p63
        $region38: #{tpu_custom_call.1} parent=31 // pred_check_branch
          %181 = sbr.rel (%p179) target = $region40
        $region39: #{tpu_custom_call.1} parent=31 // pred_region
          %182 = dma.done [#allocation6], 2048
        $region40: #{tpu_custom_call.1} parent=31 // pred_fallthru
          _
        %s183 = sand.u32 %s29, 1
        %s184 = scalar_lea.sflag [#allocation3], %s183
        %s185 = sand.u32 %s29, 1
        %s186 = smul.addr %s185, 8
        %s187 = scalar_lea.vmem [#allocation2], %s186
        %p188 = pneg %p42
        %p189 = pneg %p39
        %p190 = pneg %p63
        %p191 = pneg %p60
        %p192 = pneg %p84
        %p193 = pneg %p81
        %p194 = pneg %p110
        %p195 = pneg %p107
        %s196 = sand.u32 %s97, 1
        %s197 = scalar_lea.sflag [#allocation4], %s196
        %s198 = sand.u32 %s97, 1
        %s199 = smul.addr %s198, 8
        %s200 = scalar_lea.vmem [#allocation7], %s199
        %v201 = vld [vmem:[%s174] sm:$0xff]
        %v202 = vld [vmem:[#allocation5] sm:$0xff]
        %v203 = vld [vmem:[#allocation5 + $0x8] sm:$0xff]
        %v204 = vld [vmem:[#allocation5 + $0x10] sm:$0xff]
        %v205 = vld [vmem:[#allocation5 + $0x18] sm:$0xff]
        %v206 = vld [vmem:[#allocation5 + $0x20] sm:$0xff]
        %v207 = vld [vmem:[#allocation5 + $0x28] sm:$0xff]
        %v208 = vld [vmem:[#allocation5 + $0x30] sm:$0xff]
        %v209 = vld [vmem:[#allocation5 + $0x38] sm:$0xff]
        %v210 = vld [vmem:[#allocation5 + $0x40] sm:$0xff]
        %v211 = vld [vmem:[#allocation5 + $0x48] sm:$0xff]
        %v212 = vld [vmem:[#allocation5 + $0x50] sm:$0xff]
        %v213 = vld [vmem:[#allocation5 + $0x58] sm:$0xff]
        %v214 = vld [vmem:[#allocation5 + $0x60] sm:$0xff]
        %v215 = vld [vmem:[#allocation5 + $0x68] sm:$0xff]
        %v216 = vld [vmem:[#allocation5 + $0x70] sm:$0xff]
        %v217 = vld [vmem:[#allocation5 + $0x78] sm:$0xff]
        %v218 = vld [vmem:[%s2] sm:$0x1]
        %v219 = vld [vmem:[%s2 + $0x1] sm:$0x1]
        %v220 = vld [vmem:[%s2 + $0x2] sm:$0x1]
        %v221 = vlaneseq
        %v222 = vshrl.u32 %v221, 7
        %v223 = vsub.s32 0, %v222
        %v224 = vrot.slane %v218, %v223
        %225 = vmatprep.subr.mxu0 0.0
        %226 = vmatpush1.msra.mxu0 %v202
        %227 = vmatprep.subr.mxu0 0.0
        %228 = vmatpush1.msra.mxu0 %v203
        %229 = vmatprep.subr.mxu0 0.0
        %230 = vmatpush1.msra.mxu0 %v204
        %231 = vmatprep.subr.mxu0 0.0
        %232 = vmatpush1.msra.mxu0 %v205
        %233 = vmatprep.subr.mxu0 0.0
        %234 = vmatpush1.msra.mxu0 %v206
        %235 = vmatprep.subr.mxu0 0.0
        %236 = vmatpush1.msra.mxu0 %v207
        %237 = vmatprep.subr.mxu0 0.0
        %238 = vmatpush1.msra.mxu0 %v208
        %239 = vmatprep.subr.mxu0 0.0
        %240 = vmatpush1.msra.mxu0 %v209
        %241 = vmatprep.subr.mxu0 0.0
        %242 = vmatpush1.msra.mxu0 %v210
        %243 = vmatprep.subr.mxu0 0.0
        %244 = vmatpush1.msra.mxu0 %v211
        %245 = vmatprep.subr.mxu0 0.0
        %246 = vmatpush1.msra.mxu0 %v212
        %247 = vmatprep.subr.mxu0 0.0
        %248 = vmatpush1.msra.mxu0 %v213
        %249 = vmatprep.subr.mxu0 0.0
        %250 = vmatpush1.msra.mxu0 %v214
        %251 = vmatprep.subr.mxu0 0.0
        %252 = vmatpush1.msra.mxu0 %v215
        %253 = vmatprep.subr.mxu0 0.0
        %254 = vmatpush1.msra.mxu0 %v216
        %255 = vmatprep.subr.mxu0 0.0
        %256 = vmatpush1.msra.mxu0 %v217
        %257 = vmatprep.subr.mxu0 0.0
        %258 = vmatpush1.msra.mxu0 0.0
        %259 = vmatprep.subr.mxu0 0.0
        %260 = vmatpush1.msra.mxu0 0.0
        %261 = vmatprep.subr.mxu0 0.0
        %262 = vmatpush1.msra.mxu0 0.0
        %263 = vmatprep.subr.mxu0 0.0
        %264 = vmatpush1.msra.mxu0 0.0
        %265 = vmatprep.subr.mxu0 0.0
        %266 = vmatpush1.msra.mxu0 0.0
        %267 = vmatprep.subr.mxu0 0.0
        %268 = vmatpush1.msra.mxu0 0.0
        %269 = vmatprep.subr.mxu0 0.0
        %270 = vmatpush1.msra.mxu0 0.0
        %271 = vmatprep.subr.mxu0 0.0
        %272 = vmatpush1.msra.mxu0 0.0
        %273 = vmatprep.subr.mxu0 0.0
        %274 = vmatpush1.msra.mxu0 0.0
        %275 = vmatprep.subr.mxu0 0.0
        %276 = vmatpush1.msra.mxu0 0.0
        %277 = vmatprep.subr.mxu0 0.0
        %278 = vmatpush1.msra.mxu0 0.0
        %279 = vmatprep.subr.mxu0 0.0
        %280 = vmatpush1.msra.mxu0 0.0
        %281 = vmatprep.subr.mxu0 0.0
        %282 = vmatpush1.msra.mxu0 0.0
        %283 = vmatprep.subr.mxu0 0.0
        %284 = vmatpush1.msra.mxu0 0.0
        %285 = vmatprep.subr.mxu0 0.0
        %286 = vmatpush1.msra.mxu0 0.0
        %287 = vmatprep.subr.mxu0 0.0
        %288 = vmatpush1.msra.mxu0 0.0
        %289 = vmatprep.mubr.f32.mxu0 0.0
        %290 = vmatmul.mubr.f32.gmra.mrb[0].mxu0 %v201
        %v291 = vpop.f32.mrb[0].mxu0
        %v292 = vadd.f32 %v224, %v291
        %v293 = vpop.f32.mrb[0].mxu0
        %294 = vdwg.mxu0
        %v295 = vlaneseq
        %v296 = vand.u32 %v295, 127
        %vm297 = vcmp.lt.s32.totalorder %v296, 32
        %v298 = vsel %vm297, 1, 0
        %vm299 = vcmp.eq.s32.totalorder %v298, 1
        %v300 = vsel %vm299, %v292, 0.0
        %301 = vadd.xlane.f32.xlu0 %v300
        %v302 = vpop.xlane.xlu0 %301
        %v303 = vmul.f32 %v302, 0.03125
        %v304 = vsub.f32 %v300, %v303
        %v305 = vsel %vm299, %v304, 0.0
        %v306 = vmul.f32 %v305, %v305
        %307 = vadd.xlane.f32.xlu0 %v306
        %v308 = vpop.xlane.xlu0 %307
        %v309 = vmul.f32 %v308, 0.03125
        %v310 = vadd.f32 %v309, 1e-05
        %v311 = vrsqrt.pop %v310
        %v312 = vmul.f32 %v304, %v311
        %v313 = vlaneseq
        %v314 = vshrl.u32 %v313, 7
        %v315 = vsub.s32 0, %v314
        %v316 = vrot.slane %v219, %v315
        %v317 = vmul.f32 %v312, %v316
        %v318 = vlaneseq
        %v319 = vshrl.u32 %v318, 7
        %v320 = vsub.s32 0, %v319
        %v321 = vrot.slane %v220, %v320
        %v322 = vadd.f32 %v317, %v321
        %v323 = vmul.f32 %v322, 0.5
        %v324 = vmul.f32 %v322, 0.70710677
        %v325 = verf.f32.pop %v324
        %v326 = vadd.f32 %v325, 1.0
        %v327 = vmul.f32 %v323, %v326
        %v328 = vadd.f32 %v327, %v201
        %329 = vst [vmem:[%s200] sm:$0xff] %v328
        %s330 = sand.u32 %s97, 1
        %s331 = scalar_lea.sflag [#allocation4], %s330
        %s332 = sand.u32 %s97, 1
        %s333 = smul.addr %s332, 8
        %s334 = scalar_lea.vmem [#allocation7], %s333
        // Predicated region
        $region41: #{tpu_custom_call.1} parent=31 // pred_check
          %p335 = pneg %p107
        $region42: #{tpu_custom_call.1} parent=31 // pred_check_branch
          %337 = sbr.rel (%p335) target = $region44
        $region43: #{tpu_custom_call.1} parent=31 // pred_region
          %s339 = ssub.s32 128, 128
          %340 = vsyncadd %s331, %s339
          %s341 = smul.addr %s21, 128
          %s342 = scalar_lea.hbm %s3, %s341
          %s344 = sshll.u32 %s334, 4
          %s345 = int_to_ptr.vmem [resolvable:$true] %s344
          %347 = dma.vmem_to_hbm [thread:$0]  %s345, 128, %s342, %s331
        $region44: #{tpu_custom_call.1} parent=31 // pred_fallthru
          _
      $region32: #{tpu_custom_call.1} parent=5 // pred_fallthru
        _
      %p348 = scmp.le.s32.totalorder 2, %s16
      // Predicated region
      $region45: #{tpu_custom_call.1} parent=5 // pred_check
        %p349 = pneg %p348
      $region46: #{tpu_custom_call.1} parent=5 // pred_check_branch
        %351 = sbr.rel (%p349) target = $region48
      $region47: #{tpu_custom_call.1} parent=5 // pred_region
        %s352 = ssub.s32 %s16, 2
        // Predicated region
        $region49: #{tpu_custom_call.1} parent=47 // pred_check
          %p353 = pneg %p113
        $region50: #{tpu_custom_call.1} parent=47 // pred_check_branch
          %355 = sbr.rel (%p353) target = $region52
        $region51: #{tpu_custom_call.1} parent=47 // pred_region
          %s356 = sand.u32 %s98, 1
          %s357 = scalar_lea.sflag [#allocation4], %s356
          %s358 = sand.u32 %s98, 1
          %s359 = smul.addr %s358, 8
          %s360 = scalar_lea.vmem [#allocation7], %s359
          %361 = dma.done %s357, 128
        $region52: #{tpu_custom_call.1} parent=47 // pred_fallthru
          _
      $region48: #{tpu_custom_call.1} parent=5 // pred_fallthru
        _
    $region6: #{tpu_custom_call.1} parent=1 // loop_footer
      %s20 = sadd.s32 1, %s16
    $region7: #{tpu_custom_call.1} parent=1 // loop_footer_branch
      %15 = sbr.rel target = $region3
    $region8: #{tpu_custom_call.1} parent=1 // loop_exit
      _
    %362 = vsyncpa [#allocation3], 1
    %s363 = scalar_lea.sflag [#allocation3], 1
    %364 = vsyncpa %s363, 1
    %365 = vsyncpa [#allocation6], 1
    %366 = vsyncpa [#allocation4], 1
    %s367 = scalar_lea.sflag [#allocation4], 1
    %368 = vsyncpa %s367, 1

</llo_original>
